<compile_context>
chip_gen: v7x
topology: tpu7x:2x2x1
jax: 0.10.0
libtpu: 0.0.40
codegen_flags: <defaults>
</compile_context>

<pallas_src>
import numpy as np
import jax
import jax.numpy as jnp
from jax.experimental import pallas as pl
from jax.experimental.pallas import tpu as pltpu

# ---- configuration (module defaults, small shapes) ----
Z_DIM = 32
C_DIM = 8
W_DIM = 32
NUM_WS = 8
NUM_LAYERS = 8
EMBED_FEAT = W_DIM            # embed_features defaults to w_dim (c_dim > 0)
LAYER_FEAT = W_DIM            # layer_features defaults to w_dim
LRELU_GAIN = float(np.sqrt(2.0))
LRELU_ALPHA = 0.2
BATCH = 64

SINGLE_STEP_MAX_B = 1024      # run the whole batch in one grid step up to here
TB_GRID = 512                 # batch-tile (lane) width when gridding large batches


def _norm_2nd_moment_featmajor(t):
    # t: (features, batch) f32 ; normalize over the feature (sublane) axis
    return t * jax.lax.rsqrt(jnp.mean(t * t, axis=0, keepdims=True) + 1e-8)


def make_mapping_kernel(n_sub):
    def mapping_kernel(zc_ref, we_ref, w0z_ref, w0e_ref, wr_ref, out_ref):
        nb = out_ref.shape[1]
        sub = nb // n_sub

        zc = zc_ref[...]                      # (Z_DIM + C_DIM, nb) f32
        we = we_ref[...]                      # (EMBED, C_DIM)  bf16
        w0z = w0z_ref[...]                    # (LAYER, Z_DIM)  bf16
        w0e = w0e_ref[...]                    # (LAYER, EMBED)  bf16

        # ----- input block + fc0, per independent lane sub-block -----
        hs = []
        for j in range(n_sub):
            blk = zc[:, j * sub:(j + 1) * sub]
            x = _norm_2nd_moment_featmajor(blk[:Z_DIM])              # (32, sub)
            y = jnp.dot(we, blk[Z_DIM:].astype(jnp.bfloat16),
                        preferred_element_type=jnp.float32)          # (32, sub)
            y = _norm_2nd_moment_featmajor(y)
            # fc0 as two K=32 matmuls (no concat); sqrt(2) gain pre-folded
            h = (jnp.dot(w0z, x.astype(jnp.bfloat16),
                         preferred_element_type=jnp.float32)
                 + jnp.dot(w0e, y.astype(jnp.bfloat16),
                           preferred_element_type=jnp.float32))
            hs.append(jnp.maximum(h, LRELU_ALPHA * h))               # leaky-relu

        # ----- fc1..fc7: round-robin independent sub-blocks per layer -----
        for i in range(NUM_LAYERS - 1):
            w_i = wr_ref[i]                                          # (32, 32) bf16
            nxt = []
            for h in hs:
                t = jnp.dot(w_i, h.astype(jnp.bfloat16),
                            preferred_element_type=jnp.float32)
                nxt.append(jnp.maximum(t, LRELU_ALPHA * t))
            hs = nxt

        # lane-dense (W_DIM, nb) store; num_ws broadcast happens in the wrapper
        for j in range(n_sub):
            out_ref[:, j * sub:(j + 1) * sub] = hs[j].astype(out_ref.dtype)

    return mapping_kernel


def mapping_forward(z, c, we, w0z, w0e, wr):
    B = z.shape[0]
    # feature-major fused input slab: rows 0..Z_DIM-1 = z.T, rows Z_DIM.. = c.T
    zc_t = jnp.concatenate([z.astype(jnp.float32), c.astype(jnp.float32)],
                           axis=1).T                                 # (Z+C, B)

    if B <= SINGLE_STEP_MAX_B:
        tb, n_steps, b_pad = B, 1, B                 # one step, no pad
    else:
        tb = TB_GRID
        b_pad = ((B + tb - 1) // tb) * tb
        if b_pad != B:
            # zero-padded batch cols are safe: 0 * rsqrt(0 + 1e-8) = 0 (no NaN)
            zc_t = jnp.pad(zc_t, ((0, 0), (0, b_pad - B)))
        n_steps = b_pad // tb

    # independent 128-lane sub-blocks per step (hide MXU result latency)
    n_sub = min(4, tb // 128) if (tb % 128 == 0 and tb >= 256) else 1

    # megacore: split across cores only when each one gets real work
    semantics = ("parallel",) if (n_steps > 1 and tb >= 256) else ("arbitrary",)

    w_t = pl.pallas_call(
        make_mapping_kernel(n_sub),
        out_shape=jax.ShapeDtypeStruct((W_DIM, b_pad), jnp.float32),
        grid_spec=pltpu.PrefetchScalarGridSpec(
            num_scalar_prefetch=0,
            grid=(n_steps,),
            in_specs=[
                pl.BlockSpec((Z_DIM + C_DIM, tb), lambda b: (0, b)),        # z|c slab
                pl.BlockSpec((EMBED_FEAT, C_DIM), lambda b: (0, 0)),        # embed W
                pl.BlockSpec((LAYER_FEAT, Z_DIM), lambda b: (0, 0)),        # fc0 z-half
                pl.BlockSpec((LAYER_FEAT, EMBED_FEAT), lambda b: (0, 0)),   # fc0 y-half
                pl.BlockSpec((NUM_LAYERS - 1, LAYER_FEAT, LAYER_FEAT),
                             lambda b: (0, 0, 0)),                          # fc1..fc7
            ],
            out_specs=pl.BlockSpec((W_DIM, tb), lambda b: (0, b)),
        ),
        compiler_params=pltpu.CompilerParams(dimension_semantics=semantics),
    )(zc_t, we, w0z, w0e, wr)

    w = w_t[:, :B].T                                                 # (B, W_DIM)
    # x.unsqueeze(1).repeat([1, num_ws, 1]) — broadcast, fusable in XLA.
    # TODO(synk): if the consumer materializes this, emit a lane-replicated
    # (tb, NUM_WS*W_DIM) store from the kernel instead.
    return jnp.broadcast_to(w[:, None, :], (B, NUM_WS, W_DIM))


def ref_forward(z, c, we, w0z, w0e, wr):
    # Pure-JAX reference mirroring the kernel math (bf16 MXU inputs, f32 acc).
    # NOTE: drift vs a pure-f32 torch mapping network over 9 chained bf16
    # matmuls is small but nonzero; this reference checks the Pallas lowering.
    zt = z.astype(jnp.float32).T
    ct = c.astype(jnp.float32).T
    x = _norm_2nd_moment_featmajor(zt)
    y = _norm_2nd_moment_featmajor(
        jnp.dot(we, ct.astype(jnp.bfloat16), preferred_element_type=jnp.float32))
    h = (jnp.dot(w0z, x.astype(jnp.bfloat16), preferred_element_type=jnp.float32)
         + jnp.dot(w0e, y.astype(jnp.bfloat16), preferred_element_type=jnp.float32))
    h = jnp.maximum(h, LRELU_ALPHA * h)
    for i in range(NUM_LAYERS - 1):
        h = jnp.dot(wr[i], h.astype(jnp.bfloat16), preferred_element_type=jnp.float32)
        h = jnp.maximum(h, LRELU_ALPHA * h)
    w = h.T
    return jnp.broadcast_to(w[:, None, :], (z.shape[0], NUM_WS, W_DIM))


def make_params(key):
    # PyTorch fcl init: weight = randn(out, in) / lr_mult ; bias = 0.
    # Forward uses weight * (lr_mult / sqrt(in)) -> effective weight
    # randn(out, in)/sqrt(in), effective bias 0.  The lrelu act_gain sqrt(2) is
    # folded into each fc weight (lrelu(g*t) == g*lrelu(t) for g > 0).  Weights
    # stay in their natural (out, in) orientation, exactly what the
    # feature-major kernel (W @ h) needs.  Stored bf16 (MXU-native).
    keys = jax.random.split(key, NUM_LAYERS + 1)

    # embed (c_dim -> embed_features): linear activation, lr_mult=1, no gain
    we = (jax.random.normal(keys[0], (EMBED_FEAT, C_DIM), jnp.float32)
          / np.sqrt(C_DIM)).astype(jnp.bfloat16)                     # (32, 8)

    feats = [Z_DIM + EMBED_FEAT] + [LAYER_FEAT] * (NUM_LAYERS - 1) + [W_DIM]

    # fc0 (64 -> 32), split into z-half and y-half, gain folded in
    w0 = (jax.random.normal(keys[1], (feats[1], feats[0]), jnp.float32)
          / np.sqrt(feats[0])) * LRELU_GAIN                          # (32, 64)
    w0z = w0[:, :Z_DIM].astype(jnp.bfloat16)                         # (32, 32)
    w0e = w0[:, Z_DIM:].astype(jnp.bfloat16)                         # (32, 32)

    # fc1 .. fc7 (all 32 -> 32), gain folded in, stacked
    wr = jnp.stack([
        ((jax.random.normal(keys[1 + i], (feats[i + 1], feats[i]), jnp.float32)
          / np.sqrt(feats[i])) * LRELU_GAIN).astype(jnp.bfloat16)
        for i in range(1, NUM_LAYERS)])                              # (7, 32, 32)

    return we, w0z, w0e, wr


if __name__ == "__main__":
    key = jax.random.PRNGKey(0)
    k_param, k_z, k_c = jax.random.split(key, 3)

    we, w0z, w0e, wr = make_params(k_param)
    z = jax.random.normal(k_z, (BATCH, Z_DIM), jnp.float32)
    c = jax.random.normal(k_c, (BATCH, C_DIM), jnp.float32)

    out = jax.block_until_ready(mapping_forward(z, c, we, w0z, w0e, wr))
    ref = jax.block_until_ready(ref_forward(z, c, we, w0z, w0e, wr))

    assert out.shape == (BATCH, NUM_WS, W_DIM)
    assert np.allclose(np.asarray(out), np.asarray(ref), rtol=5e-3, atol=5e-3), \
        "Pallas output mismatch vs reference"

    print("KERNEL_OK")
</pallas_src>

<mosaic_0001>
module attributes {stable_mosaic.version = 11 : i64} {
  func.func @mapping_kernel(%arg0: i32, %arg1: memref<40x64xf32, #tpu.memory_space<vmem>>, %arg2: memref<32x8xbf16, #tpu.memory_space<vmem>>, %arg3: memref<32x32xbf16, #tpu.memory_space<vmem>>, %arg4: memref<32x32xbf16, #tpu.memory_space<vmem>>, %arg5: memref<7x32x32xbf16, #tpu.memory_space<vmem>>, %arg6: memref<32x64xf32, #tpu.memory_space<vmem>>) attributes {dimension_semantics = [#tpu.dimension_semantics<arbitrary>], iteration_bounds = array<i64: 1>, scalar_prefetch = 0 : i64, scratch_operands = 0 : i64, tpu.core_type = #tpu.core_type<tc>, window_params = [{transform_indices = @transform_0, window_bounds = array<i64: 40, 64>}, {pipeline_mode = #tpu.pipeline_mode<synchronous>, transform_indices = @transform_1, window_bounds = array<i64: 32, 8>}, {pipeline_mode = #tpu.pipeline_mode<synchronous>, transform_indices = @transform_2, window_bounds = array<i64: 32, 32>}, {pipeline_mode = #tpu.pipeline_mode<synchronous>, transform_indices = @transform_3, window_bounds = array<i64: 32, 32>}, {pipeline_mode = #tpu.pipeline_mode<synchronous>, transform_indices = @transform_4, window_bounds = array<i64: 7, 32, 32>}, {transform_indices = @transform_5, window_bounds = array<i64: 32, 64>}]} {
    %c0 = arith.constant 0 : index
    %c0_0 = arith.constant 0 : index
    %0 = vector.load %arg1[%c0, %c0_0] : memref<40x64xf32, #tpu.memory_space<vmem>>, vector<40x64xf32>
    %c0_1 = arith.constant 0 : index
    %c0_2 = arith.constant 0 : index
    %1 = vector.load %arg2[%c0_1, %c0_2] : memref<32x8xbf16, #tpu.memory_space<vmem>>, vector<32x8xbf16>
    %c0_3 = arith.constant 0 : index
    %c0_4 = arith.constant 0 : index
    %2 = vector.load %arg3[%c0_3, %c0_4] : memref<32x32xbf16, #tpu.memory_space<vmem>>, vector<32x32xbf16>
    %c0_5 = arith.constant 0 : index
    %c0_6 = arith.constant 0 : index
    %3 = vector.load %arg4[%c0_5, %c0_6] : memref<32x32xbf16, #tpu.memory_space<vmem>>, vector<32x32xbf16>
    %4 = vector.extract_strided_slice %0 {offsets = [0, 0], sizes = [32, 64], strides = [1, 1]} : vector<40x64xf32> to vector<32x64xf32>
    %5 = arith.mulf %4, %4 : vector<32x64xf32>
    %cst = arith.constant dense<0.000000e+00> : vector<64xf32>
    %6 = vector.multi_reduction <add>, %5, %cst [0] : vector<32x64xf32> to vector<64xf32>
    %7 = vector.shape_cast %6 : vector<64xf32> to vector<1x64xf32>
    %cst_7 = arith.constant 3.200000e+01 : f32
    %8 = vector.broadcast %cst_7 : f32 to vector<1x64xf32>
    %9 = arith.divf %7, %8 : vector<1x64xf32>
    %cst_8 = arith.constant 9.99999993E-9 : f32
    %10 = vector.broadcast %cst_8 : f32 to vector<1x64xf32>
    %11 = arith.addf %9, %10 : vector<1x64xf32>
    %12 = math.rsqrt %11 : vector<1x64xf32>
    %13 = vector.broadcast %12 : vector<1x64xf32> to vector<32x64xf32>
    %14 = arith.mulf %4, %13 : vector<32x64xf32>
    %15 = vector.extract_strided_slice %0 {offsets = [32, 0], sizes = [8, 64], strides = [1, 1]} : vector<40x64xf32> to vector<8x64xf32>
    %16 = arith.truncf %15 : vector<8x64xf32> to vector<8x64xbf16>
    %cst_9 = arith.constant dense<0.000000e+00> : vector<32x64xf32>
    %17 = tpu.matmul %1, %16, %cst_9 {dimension_numbers = #tpu.dot_dimension_numbers<[1], [0], [0], [1], [0, 0, 1, 1], [], []>} : vector<32x8xbf16>, vector<8x64xbf16>, vector<32x64xf32> -> vector<32x64xf32>
    %18 = arith.mulf %17, %17 : vector<32x64xf32>
    %cst_10 = arith.constant dense<0.000000e+00> : vector<64xf32>
    %19 = vector.multi_reduction <add>, %18, %cst_10 [0] : vector<32x64xf32> to vector<64xf32>
    %20 = vector.shape_cast %19 : vector<64xf32> to vector<1x64xf32>
    %cst_11 = arith.constant 3.200000e+01 : f32
    %21 = vector.broadcast %cst_11 : f32 to vector<1x64xf32>
    %22 = arith.divf %20, %21 : vector<1x64xf32>
    %cst_12 = arith.constant 9.99999993E-9 : f32
    %23 = vector.broadcast %cst_12 : f32 to vector<1x64xf32>
    %24 = arith.addf %22, %23 : vector<1x64xf32>
    %25 = math.rsqrt %24 : vector<1x64xf32>
    %26 = vector.broadcast %25 : vector<1x64xf32> to vector<32x64xf32>
    %27 = arith.mulf %17, %26 : vector<32x64xf32>
    %28 = arith.truncf %14 : vector<32x64xf32> to vector<32x64xbf16>
    %cst_13 = arith.constant dense<0.000000e+00> : vector<32x64xf32>
    %29 = tpu.matmul %2, %28, %cst_13 {dimension_numbers = #tpu.dot_dimension_numbers<[1], [0], [0], [1], [0, 0, 1, 1], [], []>} : vector<32x32xbf16>, vector<32x64xbf16>, vector<32x64xf32> -> vector<32x64xf32>
    %30 = arith.truncf %27 : vector<32x64xf32> to vector<32x64xbf16>
    %cst_14 = arith.constant dense<0.000000e+00> : vector<32x64xf32>
    %31 = tpu.matmul %3, %30, %cst_14 {dimension_numbers = #tpu.dot_dimension_numbers<[1], [0], [0], [1], [0, 0, 1, 1], [], []>} : vector<32x32xbf16>, vector<32x64xbf16>, vector<32x64xf32> -> vector<32x64xf32>
    %32 = arith.addf %29, %31 : vector<32x64xf32>
    %cst_15 = arith.constant 2.000000e-01 : f32
    %33 = vector.broadcast %cst_15 : f32 to vector<32x64xf32>
    %34 = arith.mulf %33, %32 : vector<32x64xf32>
    %35 = arith.maximumf %32, %34 : vector<32x64xf32>
    %c0_16 = arith.constant 0 : index
    %c0_17 = arith.constant 0 : index
    %c0_18 = arith.constant 0 : index
    %36 = vector.load %arg5[%c0_16, %c0_17, %c0_18] : memref<7x32x32xbf16, #tpu.memory_space<vmem>>, vector<1x32x32xbf16>
    %37 = vector.shape_cast %36 : vector<1x32x32xbf16> to vector<32x32xbf16>
    %38 = arith.truncf %35 : vector<32x64xf32> to vector<32x64xbf16>
    %cst_19 = arith.constant dense<0.000000e+00> : vector<32x64xf32>
    %39 = tpu.matmul %37, %38, %cst_19 {dimension_numbers = #tpu.dot_dimension_numbers<[1], [0], [0], [1], [0, 0, 1, 1], [], []>} : vector<32x32xbf16>, vector<32x64xbf16>, vector<32x64xf32> -> vector<32x64xf32>
    %cst_20 = arith.constant 2.000000e-01 : f32
    %40 = vector.broadcast %cst_20 : f32 to vector<32x64xf32>
    %41 = arith.mulf %40, %39 : vector<32x64xf32>
    %42 = arith.maximumf %39, %41 : vector<32x64xf32>
    %c1 = arith.constant 1 : index
    %c0_21 = arith.constant 0 : index
    %c0_22 = arith.constant 0 : index
    %43 = vector.load %arg5[%c1, %c0_21, %c0_22] : memref<7x32x32xbf16, #tpu.memory_space<vmem>>, vector<1x32x32xbf16>
    %44 = vector.shape_cast %43 : vector<1x32x32xbf16> to vector<32x32xbf16>
    %45 = arith.truncf %42 : vector<32x64xf32> to vector<32x64xbf16>
    %cst_23 = arith.constant dense<0.000000e+00> : vector<32x64xf32>
    %46 = tpu.matmul %44, %45, %cst_23 {dimension_numbers = #tpu.dot_dimension_numbers<[1], [0], [0], [1], [0, 0, 1, 1], [], []>} : vector<32x32xbf16>, vector<32x64xbf16>, vector<32x64xf32> -> vector<32x64xf32>
    %cst_24 = arith.constant 2.000000e-01 : f32
    %47 = vector.broadcast %cst_24 : f32 to vector<32x64xf32>
    %48 = arith.mulf %47, %46 : vector<32x64xf32>
    %49 = arith.maximumf %46, %48 : vector<32x64xf32>
    %c2 = arith.constant 2 : index
    %c0_25 = arith.constant 0 : index
    %c0_26 = arith.constant 0 : index
    %50 = vector.load %arg5[%c2, %c0_25, %c0_26] : memref<7x32x32xbf16, #tpu.memory_space<vmem>>, vector<1x32x32xbf16>
    %51 = vector.shape_cast %50 : vector<1x32x32xbf16> to vector<32x32xbf16>
    %52 = arith.truncf %49 : vector<32x64xf32> to vector<32x64xbf16>
    %cst_27 = arith.constant dense<0.000000e+00> : vector<32x64xf32>
    %53 = tpu.matmul %51, %52, %cst_27 {dimension_numbers = #tpu.dot_dimension_numbers<[1], [0], [0], [1], [0, 0, 1, 1], [], []>} : vector<32x32xbf16>, vector<32x64xbf16>, vector<32x64xf32> -> vector<32x64xf32>
    %cst_28 = arith.constant 2.000000e-01 : f32
    %54 = vector.broadcast %cst_28 : f32 to vector<32x64xf32>
    %55 = arith.mulf %54, %53 : vector<32x64xf32>
    %56 = arith.maximumf %53, %55 : vector<32x64xf32>
    %c3 = arith.constant 3 : index
    %c0_29 = arith.constant 0 : index
    %c0_30 = arith.constant 0 : index
    %57 = vector.load %arg5[%c3, %c0_29, %c0_30] : memref<7x32x32xbf16, #tpu.memory_space<vmem>>, vector<1x32x32xbf16>
    %58 = vector.shape_cast %57 : vector<1x32x32xbf16> to vector<32x32xbf16>
    %59 = arith.truncf %56 : vector<32x64xf32> to vector<32x64xbf16>
    %cst_31 = arith.constant dense<0.000000e+00> : vector<32x64xf32>
    %60 = tpu.matmul %58, %59, %cst_31 {dimension_numbers = #tpu.dot_dimension_numbers<[1], [0], [0], [1], [0, 0, 1, 1], [], []>} : vector<32x32xbf16>, vector<32x64xbf16>, vector<32x64xf32> -> vector<32x64xf32>
    %cst_32 = arith.constant 2.000000e-01 : f32
    %61 = vector.broadcast %cst_32 : f32 to vector<32x64xf32>
    %62 = arith.mulf %61, %60 : vector<32x64xf32>
    %63 = arith.maximumf %60, %62 : vector<32x64xf32>
    %c4 = arith.constant 4 : index
    %c0_33 = arith.constant 0 : index
    %c0_34 = arith.constant 0 : index
    %64 = vector.load %arg5[%c4, %c0_33, %c0_34] : memref<7x32x32xbf16, #tpu.memory_space<vmem>>, vector<1x32x32xbf16>
    %65 = vector.shape_cast %64 : vector<1x32x32xbf16> to vector<32x32xbf16>
    %66 = arith.truncf %63 : vector<32x64xf32> to vector<32x64xbf16>
    %cst_35 = arith.constant dense<0.000000e+00> : vector<32x64xf32>
    %67 = tpu.matmul %65, %66, %cst_35 {dimension_numbers = #tpu.dot_dimension_numbers<[1], [0], [0], [1], [0, 0, 1, 1], [], []>} : vector<32x32xbf16>, vector<32x64xbf16>, vector<32x64xf32> -> vector<32x64xf32>
    %cst_36 = arith.constant 2.000000e-01 : f32
    %68 = vector.broadcast %cst_36 : f32 to vector<32x64xf32>
    %69 = arith.mulf %68, %67 : vector<32x64xf32>
    %70 = arith.maximumf %67, %69 : vector<32x64xf32>
    %c5 = arith.constant 5 : index
    %c0_37 = arith.constant 0 : index
    %c0_38 = arith.constant 0 : index
    %71 = vector.load %arg5[%c5, %c0_37, %c0_38] : memref<7x32x32xbf16, #tpu.memory_space<vmem>>, vector<1x32x32xbf16>
    %72 = vector.shape_cast %71 : vector<1x32x32xbf16> to vector<32x32xbf16>
    %73 = arith.truncf %70 : vector<32x64xf32> to vector<32x64xbf16>
    %cst_39 = arith.constant dense<0.000000e+00> : vector<32x64xf32>
    %74 = tpu.matmul %72, %73, %cst_39 {dimension_numbers = #tpu.dot_dimension_numbers<[1], [0], [0], [1], [0, 0, 1, 1], [], []>} : vector<32x32xbf16>, vector<32x64xbf16>, vector<32x64xf32> -> vector<32x64xf32>
    %cst_40 = arith.constant 2.000000e-01 : f32
    %75 = vector.broadcast %cst_40 : f32 to vector<32x64xf32>
    %76 = arith.mulf %75, %74 : vector<32x64xf32>
    %77 = arith.maximumf %74, %76 : vector<32x64xf32>
    %c6 = arith.constant 6 : index
    %c0_41 = arith.constant 0 : index
    %c0_42 = arith.constant 0 : index
    %78 = vector.load %arg5[%c6, %c0_41, %c0_42] : memref<7x32x32xbf16, #tpu.memory_space<vmem>>, vector<1x32x32xbf16>
    %79 = vector.shape_cast %78 : vector<1x32x32xbf16> to vector<32x32xbf16>
    %80 = arith.truncf %77 : vector<32x64xf32> to vector<32x64xbf16>
    %cst_43 = arith.constant dense<0.000000e+00> : vector<32x64xf32>
    %81 = tpu.matmul %79, %80, %cst_43 {dimension_numbers = #tpu.dot_dimension_numbers<[1], [0], [0], [1], [0, 0, 1, 1], [], []>} : vector<32x32xbf16>, vector<32x64xbf16>, vector<32x64xf32> -> vector<32x64xf32>
    %cst_44 = arith.constant 2.000000e-01 : f32
    %82 = vector.broadcast %cst_44 : f32 to vector<32x64xf32>
    %83 = arith.mulf %82, %81 : vector<32x64xf32>
    %84 = arith.maximumf %81, %83 : vector<32x64xf32>
    %c0_45 = arith.constant 0 : index
    %c0_46 = arith.constant 0 : index
    %85 = vector.load %arg6[%c0_45, %c0_46] : memref<32x64xf32, #tpu.memory_space<vmem>>, vector<32x64xf32>
    tpu.vector_store %arg6[%c0_45, %c0_46], %84 {strides = array<i32>} : memref<32x64xf32, #tpu.memory_space<vmem>>, vector<32x64xf32>,
    return
  }
  func.func @transform_0(%arg0: i32) -> (i32, i32) {
    %c0_i32 = arith.constant 0 : i32
    %c0_i32_0 = arith.constant 0 : i32
    return %c0_i32, %arg0 : i32, i32
  }
  func.func @transform_1(%arg0: i32) -> (i32, i32) {
    %c0_i32 = arith.constant 0 : i32
    %c0_i32_0 = arith.constant 0 : i32
    %c0_i32_1 = arith.constant 0 : i32
    return %c0_i32, %c0_i32_0 : i32, i32
  }
  func.func @transform_2(%arg0: i32) -> (i32, i32) {
    %c0_i32 = arith.constant 0 : i32
    %c0_i32_0 = arith.constant 0 : i32
    %c0_i32_1 = arith.constant 0 : i32
    return %c0_i32, %c0_i32_0 : i32, i32
  }
  func.func @transform_3(%arg0: i32) -> (i32, i32) {
    %c0_i32 = arith.constant 0 : i32
    %c0_i32_0 = arith.constant 0 : i32
    %c0_i32_1 = arith.constant 0 : i32
    return %c0_i32, %c0_i32_0 : i32, i32
  }
  func.func @transform_4(%arg0: i32) -> (i32, i32, i32) {
    %c0_i32 = arith.constant 0 : i32
    %c0_i32_0 = arith.constant 0 : i32
    %c0_i32_1 = arith.constant 0 : i32
    %c0_i32_2 = arith.constant 0 : i32
    return %c0_i32, %c0_i32_0, %c0_i32_1 : i32, i32, i32
  }
  func.func @transform_5(%arg0: i32) -> (i32, i32) {
    %c0_i32 = arith.constant 0 : i32
    %c0_i32_0 = arith.constant 0 : i32
    return %c0_i32, %arg0 : i32, i32
  }
}

</mosaic_0001>

<llo_original>
// kernel: tpu_custom_call.1
$region0: #{tpu_custom_call.1}
  #allocation0 [shape = 'u32[]', space=smem, size = 0x4, offset = 0x4, fixed_abs, tag = 'smem constant byte address 0x4 - core index']
  #allocation1 [shape = 'u32[144,128]{1,0:T(1,128)}', space=vmem, size = 0x12000, scoped, tag = 'internal scratch']
  %s0 = inlined_call_operand.hbm [shape: f32[40,64], index: 0, kind: input, shape index: {}]
  %s1 = inlined_call_operand.vmem [shape: bf16[32,8], index: 1, kind: input, shape index: {}]
  %s2 = inlined_call_operand.vmem [shape: bf16[32,32], index: 2, kind: input, shape index: {}]
  %s3 = inlined_call_operand.hbm [shape: bf16[32,32], index: 3, kind: input, shape index: {}]
  %s4 = inlined_call_operand.hbm [shape: bf16[7,32,32], index: 4, kind: input, shape index: {}]
  %s5 = inlined_call_operand.hbm [shape: f32[32,64], index: 5, kind: output, shape index: {}]
  %s6 = sld [smem:[#allocation0]]
  $region42: #{tpu_custom_call.1} parent=0
    _
  %s8 = ssub.s32 1, %s6
  %s9 = scalar_select 0, %s8, %s6
  $region1: #{tpu_custom_call.1} parent=0
    #allocation2 [shape = 'u8[20480]{0}', space=vmem, size = 0x5000, scoped, tag = 'input window, operand 0, single buffered']
    #allocation3 [shape = 's32[1]{0}', space=sflag, size = 0x4, scoped, tag = 'scoped memory for tpu_custom_call.1']
    #allocation4 [shape = 's32[1]{0}', space=sflag, size = 0x4, scoped, tag = 'scoped memory for tpu_custom_call.1']
    #allocation5 [shape = 'u8[8192]{0}', space=vmem, size = 0x2000, scoped, tag = 'input window, operand 3, single buffered']
    #allocation6 [shape = 's32[1]{0}', space=sflag, size = 0x4, scoped, tag = 'scoped memory for tpu_custom_call.1']
    #allocation7 [shape = 'u8[57344]{0}', space=vmem, size = 0xe000, scoped, tag = 'input window, operand 4, single buffered']
    #allocation8 [shape = 'u8[16384]{0}', space=vmem, size = 0x4000, scoped, tag = 'output window, operand 0, single buffered']
    %10 = vsyncpa [#allocation3], 0
    %11 = vsyncpa [#allocation6], 0
    %12 = vsyncpa [#allocation4], 0
    // Predicated region
    $region2: #{tpu_custom_call.1} parent=1 // pred_check
      _
    $region3: #{tpu_custom_call.1} parent=1 // pred_check_branch
      %14 = sbr.rel (0) target = $region5
    $region4: #{tpu_custom_call.1} parent=1 // pred_region
      %s16 = ssub.s32 640, 640
      %17 = vsyncadd [#allocation3], %s16
      %s18 = sshll.u32 [#allocation2], 4
      %s19 = int_to_ptr.vmem [resolvable:$true] %s18
      %24 = dma.hbm_to_vmem [thread:$0]  %s0, 640, %s19, [#allocation3], 128, 128, 8
    $region5: #{tpu_custom_call.1} parent=1 // pred_fallthru
      _
    // Predicated region
    $region6: #{tpu_custom_call.1} parent=1 // pred_check
      _
    $region7: #{tpu_custom_call.1} parent=1 // pred_check_branch
      %26 = sbr.rel (0) target = $region9
    $region8: #{tpu_custom_call.1} parent=1 // pred_region
      _
    $region9: #{tpu_custom_call.1} parent=1 // pred_fallthru
      _
    // Predicated region
    $region10: #{tpu_custom_call.1} parent=1 // pred_check
      _
    $region11: #{tpu_custom_call.1} parent=1 // pred_check_branch
      %28 = sbr.rel (0) target = $region13
    $region12: #{tpu_custom_call.1} parent=1 // pred_region
      _
    $region13: #{tpu_custom_call.1} parent=1 // pred_fallthru
      _
    // Predicated region
    $region14: #{tpu_custom_call.1} parent=1 // pred_check
      _
    $region15: #{tpu_custom_call.1} parent=1 // pred_check_branch
      %30 = sbr.rel (0) target = $region17
    $region16: #{tpu_custom_call.1} parent=1 // pred_region
      %s32 = ssub.s32 256, 256
      %33 = vsyncadd [#allocation6], %s32
      %s34 = sshll.u32 [#allocation5], 4
      %s35 = int_to_ptr.vmem [resolvable:$true] %s34
      %40 = dma.hbm_to_vmem [thread:$0]  %s3, 256, %s35, [#allocation6], 64, 64, 4
    $region17: #{tpu_custom_call.1} parent=1 // pred_fallthru
      _
    // Predicated region
    $region18: #{tpu_custom_call.1} parent=1 // pred_check
      _
    $region19: #{tpu_custom_call.1} parent=1 // pred_check_branch
      %42 = sbr.rel (0) target = $region21
    $region20: #{tpu_custom_call.1} parent=1 // pred_region
      %s44 = ssub.s32 1792, 1792
      %45 = vsyncadd [#allocation6], %s44
      %s46 = sshll.u32 [#allocation7], 4
      %s47 = int_to_ptr.vmem [resolvable:$true] %s46
      %52 = dma.hbm_to_vmem [thread:$0]  %s4, 1792, %s47, [#allocation6], 64, 64, 4
    $region21: #{tpu_custom_call.1} parent=1 // pred_fallthru
      _
    // Predicated region
    $region22: #{tpu_custom_call.1} parent=1 // pred_check
      _
    $region23: #{tpu_custom_call.1} parent=1 // pred_check_branch
      %54 = sbr.rel (0) target = $region25
    $region24: #{tpu_custom_call.1} parent=1 // pred_region
      %55 = dma.done [#allocation3], 640
    $region25: #{tpu_custom_call.1} parent=1 // pred_fallthru
      _
    // Predicated region
    $region26: #{tpu_custom_call.1} parent=1 // pred_check
      _
    $region27: #{tpu_custom_call.1} parent=1 // pred_check_branch
      %57 = sbr.rel (0) target = $region29
    $region28: #{tpu_custom_call.1} parent=1 // pred_region
      %58 = dma.done [#allocation6], 256
    $region29: #{tpu_custom_call.1} parent=1 // pred_fallthru
      _
    // Predicated region
    $region30: #{tpu_custom_call.1} parent=1 // pred_check
      _
    $region31: #{tpu_custom_call.1} parent=1 // pred_check_branch
      %60 = sbr.rel (0) target = $region33
    $region32: #{tpu_custom_call.1} parent=1 // pred_region
      %61 = dma.done [#allocation6], 1792
    $region33: #{tpu_custom_call.1} parent=1 // pred_fallthru
      _
    %v63 = vld [vmem:[#allocation2] sm:$0xff]
    %v64 = vld [vmem:[#allocation2 + $0x8] sm:$0xff]
    %v65 = vld [vmem:[#allocation2 + $0x10] sm:$0xff]
    %v66 = vld [vmem:[#allocation2 + $0x18] sm:$0xff]
    %v67 = vld [vmem:[#allocation2 + $0x20] sm:$0xff]
    %v68 = vld [vmem:[%s1] sm:$0xf]
    %v69 = vld [vmem:[%s1 + $0x4] sm:$0xf]
    %v70 = vld [vmem:[%s1 + $0x8] sm:$0xf]
    %v71 = vld [vmem:[%s1 + $0xc] sm:$0xf]
    %v72 = vld [vmem:[%s2] sm:$0xf]
    %v73 = vld [vmem:[%s2 + $0x4] sm:$0xf]
    %v74 = vld [vmem:[%s2 + $0x8] sm:$0xf]
    %v75 = vld [vmem:[%s2 + $0xc] sm:$0xf]
    %v76 = vld [vmem:[#allocation5] sm:$0xf]
    %v77 = vld [vmem:[#allocation5 + $0x4] sm:$0xf]
    %v78 = vld [vmem:[#allocation5 + $0x8] sm:$0xf]
    %v79 = vld [vmem:[#allocation5 + $0xc] sm:$0xf]
    %v80 = vmul.f32 %v63, %v63
    %v81 = vmul.f32 %v64, %v64
    %v82 = vmul.f32 %v65, %v65
    %v83 = vmul.f32 %v66, %v66
    %vm84 = vcmask 523264
    %v85 = vsel %vm84, %v80, 0.0
    %v86 = vsel %vm84, %v81, 0.0
    %v87 = vadd.f32 %v85, %v86
    %v88 = vsel %vm84, %v82, 0.0
    %v89 = vadd.f32 %v87, %v88
    %v90 = vsel %vm84, %v83, 0.0
    %v91 = vadd.f32 %v89, %v90
    %v92 = vrot.slane %v91, 4
    %v93 = vadd.f32 %v91, %v92
    %v94 = vrot.slane %v93, 2
    %v95 = vadd.f32 %v93, %v94
    %v96 = vrot.slane %v95, 1
    %v97 = vadd.f32 %v95, %v96
    %v98 = vrcp.pop 32.0
    %v99 = vmul.f32 %v97, %v98
    %v100 = vadd.f32 %v99, 1e-08
    %v101 = vrsqrt.pop %v100
    %v102 = vmul.f32 %v63, %v101
    %v103 = vmul.f32 %v64, %v101
    %v104 = vmul.f32 %v65, %v101
    %v105 = vmul.f32 %v66, %v101
    %v106 = vpack.c.bf16 %v67, %v67
    %v111 = vunpack.c.l.b16 %v68
    %v112 = vunpack.c.l.b16 %v69
    %v113 = vunpack.c.l.b16 %v70
    %v114 = vunpack.c.l.b16 %v71
    %v115 = vpack.c.b16 %v112, %v111
    %v116 = vpack.c.b16 %v114, %v113
    %vm117 = vcmask 64512
    %v119 = vsel %vm117, %v115, 0
    %v122 = vsel %vm117, %v116, 0
    %vm124 = vcmask 1043456
    %v126 = vsel %vm124, %v106, 0
    %128 = vmatprep.subr.bf16.mxu0 0
    %129 = vmatpush1.bf16.msra.mxu0 %v126
    %130 = vmatprep.subr.bf16.mxu0 0
    %131 = vmatpush1.bf16.msra.mxu0 0
    %132 = vmatprep.subr.bf16.mxu0 0
    %133 = vmatpush1.bf16.msra.mxu0 0
    %134 = vmatprep.subr.bf16.mxu0 0
    %135 = vmatpush1.bf16.msra.mxu0 0
    %136 = vmatprep.subr.bf16.mxu0 0
    %137 = vmatpush1.bf16.msra.mxu0 0
    %138 = vmatprep.subr.bf16.mxu0 0
    %139 = vmatpush1.bf16.msra.mxu0 0
    %140 = vmatprep.subr.bf16.mxu0 0
    %141 = vmatpush1.bf16.msra.mxu0 0
    %142 = vmatprep.subr.bf16.mxu0 0
    %143 = vmatpush1.bf16.msra.mxu0 0
    %144 = vmatprep.subr.bf16.mxu0 0
    %145 = vmatpush1.bf16.msra.mxu0 0
    %146 = vmatprep.subr.bf16.mxu0 0
    %147 = vmatpush1.bf16.msra.mxu0 0
    %148 = vmatprep.subr.bf16.mxu0 0
    %149 = vmatpush1.bf16.msra.mxu0 0
    %150 = vmatprep.subr.bf16.mxu0 0
    %151 = vmatpush1.bf16.msra.mxu0 0
    %152 = vmatprep.subr.bf16.mxu0 0
    %153 = vmatpush1.bf16.msra.mxu0 0
    %154 = vmatprep.subr.bf16.mxu0 0
    %155 = vmatpush1.bf16.msra.mxu0 0
    %156 = vmatprep.subr.bf16.mxu0 0
    %157 = vmatpush1.bf16.msra.mxu0 0
    %158 = vmatprep.subr.bf16.mxu0 0
    %159 = vmatpush1.bf16.msra.mxu0 0
    %160 = vmatprep.mubr.bf16.mxu0 0
    %161 = vmatmul.mubr.bf16.gmra.mrb[0].mxu0 %v119
    %v162 = vpop.f32.mrb[0].mxu0
    %v163 = vadd.f32 0.0, %v162
    %v164 = vpop.f32.mrb[0].mxu0
    %v165 = vpop.f32.mrb[0].mxu0
    %v166 = vadd.f32 0.0, %v165
    %v167 = vpop.f32.mrb[0].mxu0
    %168 = vmatprep.mubr.bf16.mxu0 0
    %169 = vmatmul.mubr.bf16.gmra.mrb[0].mxu0 %v122
    %v170 = vpop.f32.mrb[0].mxu0
    %v171 = vadd.f32 0.0, %v170
    %v172 = vpop.f32.mrb[0].mxu0
    %v173 = vpop.f32.mrb[0].mxu0
    %v174 = vadd.f32 0.0, %v173
    %v175 = vpop.f32.mrb[0].mxu0
    %176 = vdwg.mxu0
    %v177 = vmul.f32 %v163, %v163
    %v178 = vmul.f32 %v166, %v166
    %v179 = vmul.f32 %v171, %v171
    %v180 = vmul.f32 %v174, %v174
    %v181 = vsel %vm84, %v177, 0.0
    %v182 = vsel %vm84, %v178, 0.0
    %v183 = vadd.f32 %v181, %v182
    %v184 = vsel %vm84, %v179, 0.0
    %v185 = vadd.f32 %v183, %v184
    %v186 = vsel %vm84, %v180, 0.0
    %v187 = vadd.f32 %v185, %v186
    %v188 = vrot.slane %v187, 4
    %v189 = vadd.f32 %v187, %v188
    %v190 = vrot.slane %v189, 2
    %v191 = vadd.f32 %v189, %v190
    %v192 = vrot.slane %v191, 1
    %v193 = vadd.f32 %v191, %v192
    %v194 = vmul.f32 %v193, %v98
    %v195 = vadd.f32 %v194, 1e-08
    %v196 = vrsqrt.pop %v195
    %v197 = vmul.f32 %v163, %v196
    %v198 = vmul.f32 %v166, %v196
    %v199 = vmul.f32 %v171, %v196
    %v200 = vmul.f32 %v174, %v196
    %v201 = vpack.c.bf16 %v103, %v102
    %v202 = vpack.c.bf16 %v105, %v104
    %v203 = vpack.c.bf16 %v198, %v197
    %v204 = vpack.c.bf16 %v200, %v199
    %v209 = vunpack.c.l.b16 %v76
    %v210 = vunpack.c.l.b16 %v77
    %v211 = vunpack.c.l.b16 %v78
    %v212 = vunpack.c.l.b16 %v79
    %v213 = vpack.c.b16 %v210, %v209
    %v214 = vpack.c.b16 %v212, %v211
    %vm215 = vcmask 261120
    %v217 = vsel %vm215, %v213, 0
    %v220 = vsel %vm215, %v214, 0
    %222 = vmatprep.subr.bf16.mxu0 0
    %223 = vmatpush1.bf16.msra.mxu0 %v203
    %224 = vmatprep.subr.bf16.mxu0 0
    %225 = vmatpush1.bf16.msra.mxu0 %v204
    %226 = vmatprep.subr.bf16.mxu0 0
    %227 = vmatpush1.bf16.msra.mxu0 0
    %228 = vmatprep.subr.bf16.mxu0 0
    %229 = vmatpush1.bf16.msra.mxu0 0
    %230 = vmatprep.subr.bf16.mxu0 0
    %231 = vmatpush1.bf16.msra.mxu0 0
    %232 = vmatprep.subr.bf16.mxu0 0
    %233 = vmatpush1.bf16.msra.mxu0 0
    %234 = vmatprep.subr.bf16.mxu0 0
    %235 = vmatpush1.bf16.msra.mxu0 0
    %236 = vmatprep.subr.bf16.mxu0 0
    %237 = vmatpush1.bf16.msra.mxu0 0
    %238 = vmatprep.subr.bf16.mxu0 0
    %239 = vmatpush1.bf16.msra.mxu0 0
    %240 = vmatprep.subr.bf16.mxu0 0
    %241 = vmatpush1.bf16.msra.mxu0 0
    %242 = vmatprep.subr.bf16.mxu0 0
    %243 = vmatpush1.bf16.msra.mxu0 0
    %244 = vmatprep.subr.bf16.mxu0 0
    %245 = vmatpush1.bf16.msra.mxu0 0
    %246 = vmatprep.subr.bf16.mxu0 0
    %247 = vmatpush1.bf16.msra.mxu0 0
    %248 = vmatprep.subr.bf16.mxu0 0
    %249 = vmatpush1.bf16.msra.mxu0 0
    %250 = vmatprep.subr.bf16.mxu0 0
    %251 = vmatpush1.bf16.msra.mxu0 0
    %252 = vmatprep.subr.bf16.mxu0 0
    %253 = vmatpush1.bf16.msra.mxu0 0
    %254 = vmatprep.mubr.bf16.mxu0 0
    %255 = vmatmul.mubr.bf16.gmra.mrb[0].mxu0 %v217
    %v256 = vpop.f32.mrb[0].mxu0
    %v257 = vadd.f32 0.0, %v256
    %v258 = vpop.f32.mrb[0].mxu0
    %v259 = vpop.f32.mrb[0].mxu0
    %v260 = vadd.f32 0.0, %v259
    %v261 = vpop.f32.mrb[0].mxu0
    %262 = vmatprep.mubr.bf16.mxu0 0
    %263 = vmatmul.mubr.bf16.gmra.mrb[0].mxu0 %v220
    %v264 = vpop.f32.mrb[0].mxu0
    %v265 = vadd.f32 0.0, %v264
    %v266 = vpop.f32.mrb[0].mxu0
    %v267 = vpop.f32.mrb[0].mxu0
    %v268 = vadd.f32 0.0, %v267
    %v269 = vpop.f32.mrb[0].mxu0
    %270 = vdwg.mxu0
    %v275 = vunpack.c.l.b16 %v72
    %v276 = vunpack.c.l.b16 %v73
    %v277 = vunpack.c.l.b16 %v74
    %v278 = vunpack.c.l.b16 %v75
    %v279 = vpack.c.b16 %v276, %v275
    %v280 = vpack.c.b16 %v278, %v277
    %v282 = vsel %vm215, %v279, 0
    %v285 = vsel %vm215, %v280, 0
    %287 = vmatprep.subr.bf16.mxu0 0
    %288 = vmatpush1.bf16.msra.mxu0 %v201
    %289 = vmatprep.subr.bf16.mxu0 0
    %290 = vmatpush1.bf16.msra.mxu0 %v202
    %291 = vmatprep.subr.bf16.mxu0 0
    %292 = vmatpush1.bf16.msra.mxu0 0
    %293 = vmatprep.subr.bf16.mxu0 0
    %294 = vmatpush1.bf16.msra.mxu0 0
    %295 = vmatprep.subr.bf16.mxu0 0
    %296 = vmatpush1.bf16.msra.mxu0 0
    %297 = vmatprep.subr.bf16.mxu0 0
    %298 = vmatpush1.bf16.msra.mxu0 0
    %299 = vmatprep.subr.bf16.mxu0 0
    %300 = vmatpush1.bf16.msra.mxu0 0
    %301 = vmatprep.subr.bf16.mxu0 0
    %302 = vmatpush1.bf16.msra.mxu0 0
    %303 = vmatprep.subr.bf16.mxu0 0
    %304 = vmatpush1.bf16.msra.mxu0 0
    %305 = vmatprep.subr.bf16.mxu0 0
    %306 = vmatpush1.bf16.msra.mxu0 0
    %307 = vmatprep.subr.bf16.mxu0 0
    %308 = vmatpush1.bf16.msra.mxu0 0
    %309 = vmatprep.subr.bf16.mxu0 0
    %310 = vmatpush1.bf16.msra.mxu0 0
    %311 = vmatprep.subr.bf16.mxu0 0
    %312 = vmatpush1.bf16.msra.mxu0 0
    %313 = vmatprep.subr.bf16.mxu0 0
    %314 = vmatpush1.bf16.msra.mxu0 0
    %315 = vmatprep.subr.bf16.mxu0 0
    %316 = vmatpush1.bf16.msra.mxu0 0
    %317 = vmatprep.subr.bf16.mxu0 0
    %318 = vmatpush1.bf16.msra.mxu0 0
    %319 = vmatprep.mubr.bf16.mxu0 0
    %320 = vmatmul.mubr.bf16.gmra.mrb[0].mxu0 %v282
    %v321 = vpop.f32.mrb[0].mxu0
    %v322 = vadd.f32 %v257, %v321
    %v323 = vpop.f32.mrb[0].mxu0
    %v324 = vpop.f32.mrb[0].mxu0
    %v325 = vadd.f32 %v260, %v324
    %v326 = vpop.f32.mrb[0].mxu0
    %327 = vmatprep.mubr.bf16.mxu0 0
    %328 = vmatmul.mubr.bf16.gmra.mrb[0].mxu0 %v285
    %v329 = vpop.f32.mrb[0].mxu0
    %v330 = vadd.f32 %v265, %v329
    %v331 = vpop.f32.mrb[0].mxu0
    %v332 = vpop.f32.mrb[0].mxu0
    %v333 = vadd.f32 %v268, %v332
    %v334 = vpop.f32.mrb[0].mxu0
    %335 = vdwg.mxu0
    %v336 = vmul.f32 %v322, 0.2
    %v337 = vmul.f32 %v325, 0.2
    %v338 = vmul.f32 %v330, 0.2
    %v339 = vmul.f32 %v333, 0.2
    %v340 = vmax.f32 %v322, %v336
    %v341 = vmax.f32 %v325, %v337
    %v342 = vmax.f32 %v330, %v338
    %v343 = vmax.f32 %v333, %v339
    %v344 = vld [vmem:[#allocation7] sm:$0xf]
    %v345 = vld [vmem:[#allocation7 + $0x4] sm:$0xf]
    %v346 = vld [vmem:[#allocation7 + $0x8] sm:$0xf]
    %v347 = vld [vmem:[#allocation7 + $0xc] sm:$0xf]
    %v348 = vpack.c.bf16 %v341, %v340
    %v349 = vpack.c.bf16 %v343, %v342
    %v354 = vunpack.c.l.b16 %v344
    %v355 = vunpack.c.l.b16 %v345
    %v356 = vunpack.c.l.b16 %v346
    %v357 = vunpack.c.l.b16 %v347
    %v358 = vpack.c.b16 %v355, %v354
    %v359 = vpack.c.b16 %v357, %v356
    %v361 = vsel %vm215, %v358, 0
    %v364 = vsel %vm215, %v359, 0
    %366 = vmatprep.subr.bf16.mxu0 0
    %367 = vmatpush1.bf16.msra.mxu0 %v348
    %368 = vmatprep.subr.bf16.mxu0 0
    %369 = vmatpush1.bf16.msra.mxu0 %v349
    %370 = vmatprep.subr.bf16.mxu0 0
    %371 = vmatpush1.bf16.msra.mxu0 0
    %372 = vmatprep.subr.bf16.mxu0 0
    %373 = vmatpush1.bf16.msra.mxu0 0
    %374 = vmatprep.subr.bf16.mxu0 0
    %375 = vmatpush1.bf16.msra.mxu0 0
    %376 = vmatprep.subr.bf16.mxu0 0
    %377 = vmatpush1.bf16.msra.mxu0 0
    %378 = vmatprep.subr.bf16.mxu0 0
    %379 = vmatpush1.bf16.msra.mxu0 0
    %380 = vmatprep.subr.bf16.mxu0 0
    %381 = vmatpush1.bf16.msra.mxu0 0
    %382 = vmatprep.subr.bf16.mxu0 0
    %383 = vmatpush1.bf16.msra.mxu0 0
    %384 = vmatprep.subr.bf16.mxu0 0
    %385 = vmatpush1.bf16.msra.mxu0 0
    %386 = vmatprep.subr.bf16.mxu0 0
    %387 = vmatpush1.bf16.msra.mxu0 0
    %388 = vmatprep.subr.bf16.mxu0 0
    %389 = vmatpush1.bf16.msra.mxu0 0
    %390 = vmatprep.subr.bf16.mxu0 0
    %391 = vmatpush1.bf16.msra.mxu0 0
    %392 = vmatprep.subr.bf16.mxu0 0
    %393 = vmatpush1.bf16.msra.mxu0 0
    %394 = vmatprep.subr.bf16.mxu0 0
    %395 = vmatpush1.bf16.msra.mxu0 0
    %396 = vmatprep.subr.bf16.mxu0 0
    %397 = vmatpush1.bf16.msra.mxu0 0
    %398 = vmatprep.mubr.bf16.mxu0 0
    %399 = vmatmul.mubr.bf16.gmra.mrb[0].mxu0 %v361
    %v400 = vpop.f32.mrb[0].mxu0
    %v401 = vadd.f32 0.0, %v400
    %v402 = vpop.f32.mrb[0].mxu0
    %v403 = vpop.f32.mrb[0].mxu0
    %v404 = vadd.f32 0.0, %v403
    %v405 = vpop.f32.mrb[0].mxu0
    %406 = vmatprep.mubr.bf16.mxu0 0
    %407 = vmatmul.mubr.bf16.gmra.mrb[0].mxu0 %v364
    %v408 = vpop.f32.mrb[0].mxu0
    %v409 = vadd.f32 0.0, %v408
    %v410 = vpop.f32.mrb[0].mxu0
    %v411 = vpop.f32.mrb[0].mxu0
    %v412 = vadd.f32 0.0, %v411
    %v413 = vpop.f32.mrb[0].mxu0
    %414 = vdwg.mxu0
    %v415 = vmul.f32 %v401, 0.2
    %v416 = vmul.f32 %v404, 0.2
    %v417 = vmul.f32 %v409, 0.2
    %v418 = vmul.f32 %v412, 0.2
    %v419 = vmax.f32 %v401, %v415
    %v420 = vmax.f32 %v404, %v416
    %v421 = vmax.f32 %v409, %v417
    %v422 = vmax.f32 %v412, %v418
    %s423 = scalar_lea.vmem [#allocation7], 16
    %v424 = vld [vmem:[%s423] sm:$0xf]
    %v425 = vld [vmem:[%s423 + $0x4] sm:$0xf]
    %v426 = vld [vmem:[%s423 + $0x8] sm:$0xf]
    %v427 = vld [vmem:[%s423 + $0xc] sm:$0xf]
    %v428 = vpack.c.bf16 %v420, %v419
    %v429 = vpack.c.bf16 %v422, %v421
    %v434 = vunpack.c.l.b16 %v424
    %v435 = vunpack.c.l.b16 %v425
    %v436 = vunpack.c.l.b16 %v426
    %v437 = vunpack.c.l.b16 %v427
    %v438 = vpack.c.b16 %v435, %v434
    %v439 = vpack.c.b16 %v437, %v436
    %v441 = vsel %vm215, %v438, 0
    %v444 = vsel %vm215, %v439, 0
    %446 = vmatprep.subr.bf16.mxu0 0
    %447 = vmatpush1.bf16.msra.mxu0 %v428
    %448 = vmatprep.subr.bf16.mxu0 0
    %449 = vmatpush1.bf16.msra.mxu0 %v429
    %450 = vmatprep.subr.bf16.mxu0 0
    %451 = vmatpush1.bf16.msra.mxu0 0
    %452 = vmatprep.subr.bf16.mxu0 0
    %453 = vmatpush1.bf16.msra.mxu0 0
    %454 = vmatprep.subr.bf16.mxu0 0
    %455 = vmatpush1.bf16.msra.mxu0 0
    %456 = vmatprep.subr.bf16.mxu0 0
    %457 = vmatpush1.bf16.msra.mxu0 0
    %458 = vmatprep.subr.bf16.mxu0 0
    %459 = vmatpush1.bf16.msra.mxu0 0
    %460 = vmatprep.subr.bf16.mxu0 0
    %461 = vmatpush1.bf16.msra.mxu0 0
    %462 = vmatprep.subr.bf16.mxu0 0
    %463 = vmatpush1.bf16.msra.mxu0 0
    %464 = vmatprep.subr.bf16.mxu0 0
    %465 = vmatpush1.bf16.msra.mxu0 0
    %466 = vmatprep.subr.bf16.mxu0 0
    %467 = vmatpush1.bf16.msra.mxu0 0
    %468 = vmatprep.subr.bf16.mxu0 0
    %469 = vmatpush1.bf16.msra.mxu0 0
    %470 = vmatprep.subr.bf16.mxu0 0
    %471 = vmatpush1.bf16.msra.mxu0 0
    %472 = vmatprep.subr.bf16.mxu0 0
    %473 = vmatpush1.bf16.msra.mxu0 0
    %474 = vmatprep.subr.bf16.mxu0 0
    %475 = vmatpush1.bf16.msra.mxu0 0
    %476 = vmatprep.subr.bf16.mxu0 0
    %477 = vmatpush1.bf16.msra.mxu0 0
    %478 = vmatprep.mubr.bf16.mxu0 0
    %479 = vmatmul.mubr.bf16.gmra.mrb[0].mxu0 %v441
    %v480 = vpop.f32.mrb[0].mxu0
    %v481 = vadd.f32 0.0, %v480
    %v482 = vpop.f32.mrb[0].mxu0
    %v483 = vpop.f32.mrb[0].mxu0
    %v484 = vadd.f32 0.0, %v483
    %v485 = vpop.f32.mrb[0].mxu0
    %486 = vmatprep.mubr.bf16.mxu0 0
    %487 = vmatmul.mubr.bf16.gmra.mrb[0].mxu0 %v444
    %v488 = vpop.f32.mrb[0].mxu0
    %v489 = vadd.f32 0.0, %v488
    %v490 = vpop.f32.mrb[0].mxu0
    %v491 = vpop.f32.mrb[0].mxu0
    %v492 = vadd.f32 0.0, %v491
    %v493 = vpop.f32.mrb[0].mxu0
    %494 = vdwg.mxu0
    %v495 = vmul.f32 %v481, 0.2
    %v496 = vmul.f32 %v484, 0.2
    %v497 = vmul.f32 %v489, 0.2
    %v498 = vmul.f32 %v492, 0.2
    %v499 = vmax.f32 %v481, %v495
    %v500 = vmax.f32 %v484, %v496
    %v501 = vmax.f32 %v489, %v497
    %v502 = vmax.f32 %v492, %v498
    %s503 = scalar_lea.vmem [#allocation7], 32
    %v504 = vld [vmem:[%s503] sm:$0xf]
    %v505 = vld [vmem:[%s503 + $0x4] sm:$0xf]
    %v506 = vld [vmem:[%s503 + $0x8] sm:$0xf]
    %v507 = vld [vmem:[%s503 + $0xc] sm:$0xf]
    %v508 = vpack.c.bf16 %v500, %v499
    %v509 = vpack.c.bf16 %v502, %v501
    %v514 = vunpack.c.l.b16 %v504
    %v515 = vunpack.c.l.b16 %v505
    %v516 = vunpack.c.l.b16 %v506
    %v517 = vunpack.c.l.b16 %v507
    %v518 = vpack.c.b16 %v515, %v514
    %v519 = vpack.c.b16 %v517, %v516
    %v521 = vsel %vm215, %v518, 0
    %v524 = vsel %vm215, %v519, 0
    %526 = vmatprep.subr.bf16.mxu0 0
    %527 = vmatpush1.bf16.msra.mxu0 %v508
    %528 = vmatprep.subr.bf16.mxu0 0
    %529 = vmatpush1.bf16.msra.mxu0 %v509
    %530 = vmatprep.subr.bf16.mxu0 0
    %531 = vmatpush1.bf16.msra.mxu0 0
    %532 = vmatprep.subr.bf16.mxu0 0
    %533 = vmatpush1.bf16.msra.mxu0 0
    %534 = vmatprep.subr.bf16.mxu0 0
    %535 = vmatpush1.bf16.msra.mxu0 0
    %536 = vmatprep.subr.bf16.mxu0 0
    %537 = vmatpush1.bf16.msra.mxu0 0
    %538 = vmatprep.subr.bf16.mxu0 0
    %539 = vmatpush1.bf16.msra.mxu0 0
    %540 = vmatprep.subr.bf16.mxu0 0
    %541 = vmatpush1.bf16.msra.mxu0 0
    %542 = vmatprep.subr.bf16.mxu0 0
    %543 = vmatpush1.bf16.msra.mxu0 0
    %544 = vmatprep.subr.bf16.mxu0 0
    %545 = vmatpush1.bf16.msra.mxu0 0
    %546 = vmatprep.subr.bf16.mxu0 0
    %547 = vmatpush1.bf16.msra.mxu0 0
    %548 = vmatprep.subr.bf16.mxu0 0
    %549 = vmatpush1.bf16.msra.mxu0 0
    %550 = vmatprep.subr.bf16.mxu0 0
    %551 = vmatpush1.bf16.msra.mxu0 0
    %552 = vmatprep.subr.bf16.mxu0 0
    %553 = vmatpush1.bf16.msra.mxu0 0
    %554 = vmatprep.subr.bf16.mxu0 0
    %555 = vmatpush1.bf16.msra.mxu0 0
    %556 = vmatprep.subr.bf16.mxu0 0
    %557 = vmatpush1.bf16.msra.mxu0 0
    %558 = vmatprep.mubr.bf16.mxu0 0
    %559 = vmatmul.mubr.bf16.gmra.mrb[0].mxu0 %v521
    %v560 = vpop.f32.mrb[0].mxu0
    %v561 = vadd.f32 0.0, %v560
    %v562 = vpop.f32.mrb[0].mxu0
    %v563 = vpop.f32.mrb[0].mxu0
    %v564 = vadd.f32 0.0, %v563
    %v565 = vpop.f32.mrb[0].mxu0
    %566 = vmatprep.mubr.bf16.mxu0 0
    %567 = vmatmul.mubr.bf16.gmra.mrb[0].mxu0 %v524
    %v568 = vpop.f32.mrb[0].mxu0
    %v569 = vadd.f32 0.0, %v568
    %v570 = vpop.f32.mrb[0].mxu0
    %v571 = vpop.f32.mrb[0].mxu0
    %v572 = vadd.f32 0.0, %v571
    %v573 = vpop.f32.mrb[0].mxu0
    %574 = vdwg.mxu0
    %v575 = vmul.f32 %v561, 0.2
    %v576 = vmul.f32 %v564, 0.2
    %v577 = vmul.f32 %v569, 0.2
    %v578 = vmul.f32 %v572, 0.2
    %v579 = vmax.f32 %v561, %v575
    %v580 = vmax.f32 %v564, %v576
    %v581 = vmax.f32 %v569, %v577
    %v582 = vmax.f32 %v572, %v578
    %s583 = scalar_lea.vmem [#allocation7], 48
    %v584 = vld [vmem:[%s583] sm:$0xf]
    %v585 = vld [vmem:[%s583 + $0x4] sm:$0xf]
    %v586 = vld [vmem:[%s583 + $0x8] sm:$0xf]
    %v587 = vld [vmem:[%s583 + $0xc] sm:$0xf]
    %v588 = vpack.c.bf16 %v580, %v579
    %v589 = vpack.c.bf16 %v582, %v581
    %v594 = vunpack.c.l.b16 %v584
    %v595 = vunpack.c.l.b16 %v585
    %v596 = vunpack.c.l.b16 %v586
    %v597 = vunpack.c.l.b16 %v587
    %v598 = vpack.c.b16 %v595, %v594
    %v599 = vpack.c.b16 %v597, %v596
    %v601 = vsel %vm215, %v598, 0
    %v604 = vsel %vm215, %v599, 0
    %606 = vmatprep.subr.bf16.mxu0 0
    %607 = vmatpush1.bf16.msra.mxu0 %v588
    %608 = vmatprep.subr.bf16.mxu0 0
    %609 = vmatpush1.bf16.msra.mxu0 %v589
    %610 = vmatprep.subr.bf16.mxu0 0
    %611 = vmatpush1.bf16.msra.mxu0 0
    %612 = vmatprep.subr.bf16.mxu0 0
    %613 = vmatpush1.bf16.msra.mxu0 0
    %614 = vmatprep.subr.bf16.mxu0 0
    %615 = vmatpush1.bf16.msra.mxu0 0
    %616 = vmatprep.subr.bf16.mxu0 0
    %617 = vmatpush1.bf16.msra.mxu0 0
    %618 = vmatprep.subr.bf16.mxu0 0
    %619 = vmatpush1.bf16.msra.mxu0 0
    %620 = vmatprep.subr.bf16.mxu0 0
    %621 = vmatpush1.bf16.msra.mxu0 0
    %622 = vmatprep.subr.bf16.mxu0 0
    %623 = vmatpush1.bf16.msra.mxu0 0
    %624 = vmatprep.subr.bf16.mxu0 0
    %625 = vmatpush1.bf16.msra.mxu0 0
    %626 = vmatprep.subr.bf16.mxu0 0
    %627 = vmatpush1.bf16.msra.mxu0 0
    %628 = vmatprep.subr.bf16.mxu0 0
    %629 = vmatpush1.bf16.msra.mxu0 0
    %630 = vmatprep.subr.bf16.mxu0 0
    %631 = vmatpush1.bf16.msra.mxu0 0
    %632 = vmatprep.subr.bf16.mxu0 0
    %633 = vmatpush1.bf16.msra.mxu0 0
    %634 = vmatprep.subr.bf16.mxu0 0
    %635 = vmatpush1.bf16.msra.mxu0 0
    %636 = vmatprep.subr.bf16.mxu0 0
    %637 = vmatpush1.bf16.msra.mxu0 0
    %638 = vmatprep.mubr.bf16.mxu0 0
    %639 = vmatmul.mubr.bf16.gmra.mrb[0].mxu0 %v601
    %v640 = vpop.f32.mrb[0].mxu0
    %v641 = vadd.f32 0.0, %v640
    %v642 = vpop.f32.mrb[0].mxu0
    %v643 = vpop.f32.mrb[0].mxu0
    %v644 = vadd.f32 0.0, %v643
    %v645 = vpop.f32.mrb[0].mxu0
    %646 = vmatprep.mubr.bf16.mxu0 0
    %647 = vmatmul.mubr.bf16.gmra.mrb[0].mxu0 %v604
    %v648 = vpop.f32.mrb[0].mxu0
    %v649 = vadd.f32 0.0, %v648
    %v650 = vpop.f32.mrb[0].mxu0
    %v651 = vpop.f32.mrb[0].mxu0
    %v652 = vadd.f32 0.0, %v651
    %v653 = vpop.f32.mrb[0].mxu0
    %654 = vdwg.mxu0
    %v655 = vmul.f32 %v641, 0.2
    %v656 = vmul.f32 %v644, 0.2
    %v657 = vmul.f32 %v649, 0.2
    %v658 = vmul.f32 %v652, 0.2
    %v659 = vmax.f32 %v641, %v655
    %v660 = vmax.f32 %v644, %v656
    %v661 = vmax.f32 %v649, %v657
    %v662 = vmax.f32 %v652, %v658
    %s663 = scalar_lea.vmem [#allocation7], 64
    %v664 = vld [vmem:[%s663] sm:$0xf]
    %v665 = vld [vmem:[%s663 + $0x4] sm:$0xf]
    %v666 = vld [vmem:[%s663 + $0x8] sm:$0xf]
    %v667 = vld [vmem:[%s663 + $0xc] sm:$0xf]
    %v668 = vpack.c.bf16 %v660, %v659
    %v669 = vpack.c.bf16 %v662, %v661
    %v674 = vunpack.c.l.b16 %v664
    %v675 = vunpack.c.l.b16 %v665
    %v676 = vunpack.c.l.b16 %v666
    %v677 = vunpack.c.l.b16 %v667
    %v678 = vpack.c.b16 %v675, %v674
    %v679 = vpack.c.b16 %v677, %v676
    %v681 = vsel %vm215, %v678, 0
    %v684 = vsel %vm215, %v679, 0
    %686 = vmatprep.subr.bf16.mxu0 0
    %687 = vmatpush1.bf16.msra.mxu0 %v668
    %688 = vmatprep.subr.bf16.mxu0 0
    %689 = vmatpush1.bf16.msra.mxu0 %v669
    %690 = vmatprep.subr.bf16.mxu0 0
    %691 = vmatpush1.bf16.msra.mxu0 0
    %692 = vmatprep.subr.bf16.mxu0 0
    %693 = vmatpush1.bf16.msra.mxu0 0
    %694 = vmatprep.subr.bf16.mxu0 0
    %695 = vmatpush1.bf16.msra.mxu0 0
    %696 = vmatprep.subr.bf16.mxu0 0
    %697 = vmatpush1.bf16.msra.mxu0 0
    %698 = vmatprep.subr.bf16.mxu0 0
    %699 = vmatpush1.bf16.msra.mxu0 0
    %700 = vmatprep.subr.bf16.mxu0 0
    %701 = vmatpush1.bf16.msra.mxu0 0
    %702 = vmatprep.subr.bf16.mxu0 0
    %703 = vmatpush1.bf16.msra.mxu0 0
    %704 = vmatprep.subr.bf16.mxu0 0
    %705 = vmatpush1.bf16.msra.mxu0 0
    %706 = vmatprep.subr.bf16.mxu0 0
    %707 = vmatpush1.bf16.msra.mxu0 0
    %708 = vmatprep.subr.bf16.mxu0 0
    %709 = vmatpush1.bf16.msra.mxu0 0
    %710 = vmatprep.subr.bf16.mxu0 0
    %711 = vmatpush1.bf16.msra.mxu0 0
    %712 = vmatprep.subr.bf16.mxu0 0
    %713 = vmatpush1.bf16.msra.mxu0 0
    %714 = vmatprep.subr.bf16.mxu0 0
    %715 = vmatpush1.bf16.msra.mxu0 0
    %716 = vmatprep.subr.bf16.mxu0 0
    %717 = vmatpush1.bf16.msra.mxu0 0
    %718 = vmatprep.mubr.bf16.mxu0 0
    %719 = vmatmul.mubr.bf16.gmra.mrb[0].mxu0 %v681
    %v720 = vpop.f32.mrb[0].mxu0
    %v721 = vadd.f32 0.0, %v720
    %v722 = vpop.f32.mrb[0].mxu0
    %v723 = vpop.f32.mrb[0].mxu0
    %v724 = vadd.f32 0.0, %v723
    %v725 = vpop.f32.mrb[0].mxu0
    %726 = vmatprep.mubr.bf16.mxu0 0
    %727 = vmatmul.mubr.bf16.gmra.mrb[0].mxu0 %v684
    %v728 = vpop.f32.mrb[0].mxu0
    %v729 = vadd.f32 0.0, %v728
    %v730 = vpop.f32.mrb[0].mxu0
    %v731 = vpop.f32.mrb[0].mxu0
    %v732 = vadd.f32 0.0, %v731
    %v733 = vpop.f32.mrb[0].mxu0
    %734 = vdwg.mxu0
    %v735 = vmul.f32 %v721, 0.2
    %v736 = vmul.f32 %v724, 0.2
    %v737 = vmul.f32 %v729, 0.2
    %v738 = vmul.f32 %v732, 0.2
    %v739 = vmax.f32 %v721, %v735
    %v740 = vmax.f32 %v724, %v736
    %v741 = vmax.f32 %v729, %v737
    %v742 = vmax.f32 %v732, %v738
    %s743 = scalar_lea.vmem [#allocation7], 80
    %v744 = vld [vmem:[%s743] sm:$0xf]
    %v745 = vld [vmem:[%s743 + $0x4] sm:$0xf]
    %v746 = vld [vmem:[%s743 + $0x8] sm:$0xf]
    %v747 = vld [vmem:[%s743 + $0xc] sm:$0xf]
    %v748 = vpack.c.bf16 %v740, %v739
    %v749 = vpack.c.bf16 %v742, %v741
    %v754 = vunpack.c.l.b16 %v744
    %v755 = vunpack.c.l.b16 %v745
    %v756 = vunpack.c.l.b16 %v746
    %v757 = vunpack.c.l.b16 %v747
    %v758 = vpack.c.b16 %v755, %v754
    %v759 = vpack.c.b16 %v757, %v756
    %v761 = vsel %vm215, %v758, 0
    %v764 = vsel %vm215, %v759, 0
    %766 = vmatprep.subr.bf16.mxu0 0
    %767 = vmatpush1.bf16.msra.mxu0 %v748
    %768 = vmatprep.subr.bf16.mxu0 0
    %769 = vmatpush1.bf16.msra.mxu0 %v749
    %770 = vmatprep.subr.bf16.mxu0 0
    %771 = vmatpush1.bf16.msra.mxu0 0
    %772 = vmatprep.subr.bf16.mxu0 0
    %773 = vmatpush1.bf16.msra.mxu0 0
    %774 = vmatprep.subr.bf16.mxu0 0
    %775 = vmatpush1.bf16.msra.mxu0 0
    %776 = vmatprep.subr.bf16.mxu0 0
    %777 = vmatpush1.bf16.msra.mxu0 0
    %778 = vmatprep.subr.bf16.mxu0 0
    %779 = vmatpush1.bf16.msra.mxu0 0
    %780 = vmatprep.subr.bf16.mxu0 0
    %781 = vmatpush1.bf16.msra.mxu0 0
    %782 = vmatprep.subr.bf16.mxu0 0
    %783 = vmatpush1.bf16.msra.mxu0 0
    %784 = vmatprep.subr.bf16.mxu0 0
    %785 = vmatpush1.bf16.msra.mxu0 0
    %786 = vmatprep.subr.bf16.mxu0 0
    %787 = vmatpush1.bf16.msra.mxu0 0
    %788 = vmatprep.subr.bf16.mxu0 0
    %789 = vmatpush1.bf16.msra.mxu0 0
    %790 = vmatprep.subr.bf16.mxu0 0
    %791 = vmatpush1.bf16.msra.mxu0 0
    %792 = vmatprep.subr.bf16.mxu0 0
    %793 = vmatpush1.bf16.msra.mxu0 0
    %794 = vmatprep.subr.bf16.mxu0 0
    %795 = vmatpush1.bf16.msra.mxu0 0
    %796 = vmatprep.subr.bf16.mxu0 0
    %797 = vmatpush1.bf16.msra.mxu0 0
    %798 = vmatprep.mubr.bf16.mxu0 0
    %799 = vmatmul.mubr.bf16.gmra.mrb[0].mxu0 %v761
    %v800 = vpop.f32.mrb[0].mxu0
    %v801 = vadd.f32 0.0, %v800
    %v802 = vpop.f32.mrb[0].mxu0
    %v803 = vpop.f32.mrb[0].mxu0
    %v804 = vadd.f32 0.0, %v803
    %v805 = vpop.f32.mrb[0].mxu0
    %806 = vmatprep.mubr.bf16.mxu0 0
    %807 = vmatmul.mubr.bf16.gmra.mrb[0].mxu0 %v764
    %v808 = vpop.f32.mrb[0].mxu0
    %v809 = vadd.f32 0.0, %v808
    %v810 = vpop.f32.mrb[0].mxu0
    %v811 = vpop.f32.mrb[0].mxu0
    %v812 = vadd.f32 0.0, %v811
    %v813 = vpop.f32.mrb[0].mxu0
    %814 = vdwg.mxu0
    %v815 = vmul.f32 %v801, 0.2
    %v816 = vmul.f32 %v804, 0.2
    %v817 = vmul.f32 %v809, 0.2
    %v818 = vmul.f32 %v812, 0.2
    %v819 = vmax.f32 %v801, %v815
    %v820 = vmax.f32 %v804, %v816
    %v821 = vmax.f32 %v809, %v817
    %v822 = vmax.f32 %v812, %v818
    %s823 = scalar_lea.vmem [#allocation7], 96
    %v824 = vld [vmem:[%s823] sm:$0xf]
    %v825 = vld [vmem:[%s823 + $0x4] sm:$0xf]
    %v826 = vld [vmem:[%s823 + $0x8] sm:$0xf]
    %v827 = vld [vmem:[%s823 + $0xc] sm:$0xf]
    %v828 = vpack.c.bf16 %v820, %v819
    %v829 = vpack.c.bf16 %v822, %v821
    %v834 = vunpack.c.l.b16 %v824
    %v835 = vunpack.c.l.b16 %v825
    %v836 = vunpack.c.l.b16 %v826
    %v837 = vunpack.c.l.b16 %v827
    %v838 = vpack.c.b16 %v835, %v834
    %v839 = vpack.c.b16 %v837, %v836
    %v841 = vsel %vm215, %v838, 0
    %v844 = vsel %vm215, %v839, 0
    %846 = vmatprep.subr.bf16.mxu0 0
    %847 = vmatpush1.bf16.msra.mxu0 %v828
    %848 = vmatprep.subr.bf16.mxu0 0
    %849 = vmatpush1.bf16.msra.mxu0 %v829
    %850 = vmatprep.subr.bf16.mxu0 0
    %851 = vmatpush1.bf16.msra.mxu0 0
    %852 = vmatprep.subr.bf16.mxu0 0
    %853 = vmatpush1.bf16.msra.mxu0 0
    %854 = vmatprep.subr.bf16.mxu0 0
    %855 = vmatpush1.bf16.msra.mxu0 0
    %856 = vmatprep.subr.bf16.mxu0 0
    %857 = vmatpush1.bf16.msra.mxu0 0
    %858 = vmatprep.subr.bf16.mxu0 0
    %859 = vmatpush1.bf16.msra.mxu0 0
    %860 = vmatprep.subr.bf16.mxu0 0
    %861 = vmatpush1.bf16.msra.mxu0 0
    %862 = vmatprep.subr.bf16.mxu0 0
    %863 = vmatpush1.bf16.msra.mxu0 0
    %864 = vmatprep.subr.bf16.mxu0 0
    %865 = vmatpush1.bf16.msra.mxu0 0
    %866 = vmatprep.subr.bf16.mxu0 0
    %867 = vmatpush1.bf16.msra.mxu0 0
    %868 = vmatprep.subr.bf16.mxu0 0
    %869 = vmatpush1.bf16.msra.mxu0 0
    %870 = vmatprep.subr.bf16.mxu0 0
    %871 = vmatpush1.bf16.msra.mxu0 0
    %872 = vmatprep.subr.bf16.mxu0 0
    %873 = vmatpush1.bf16.msra.mxu0 0
    %874 = vmatprep.subr.bf16.mxu0 0
    %875 = vmatpush1.bf16.msra.mxu0 0
    %876 = vmatprep.subr.bf16.mxu0 0
    %877 = vmatpush1.bf16.msra.mxu0 0
    %878 = vmatprep.mubr.bf16.mxu0 0
    %879 = vmatmul.mubr.bf16.gmra.mrb[0].mxu0 %v841
    %v880 = vpop.f32.mrb[0].mxu0
    %v881 = vadd.f32 0.0, %v880
    %v882 = vpop.f32.mrb[0].mxu0
    %v883 = vpop.f32.mrb[0].mxu0
    %v884 = vadd.f32 0.0, %v883
    %v885 = vpop.f32.mrb[0].mxu0
    %886 = vmatprep.mubr.bf16.mxu0 0
    %887 = vmatmul.mubr.bf16.gmra.mrb[0].mxu0 %v844
    %v888 = vpop.f32.mrb[0].mxu0
    %v889 = vadd.f32 0.0, %v888
    %v890 = vpop.f32.mrb[0].mxu0
    %v891 = vpop.f32.mrb[0].mxu0
    %v892 = vadd.f32 0.0, %v891
    %v893 = vpop.f32.mrb[0].mxu0
    %894 = vdwg.mxu0
    %v895 = vmul.f32 %v881, 0.2
    %v896 = vmul.f32 %v884, 0.2
    %v897 = vmul.f32 %v889, 0.2
    %v898 = vmul.f32 %v892, 0.2
    %v899 = vmax.f32 %v881, %v895
    %v900 = vmax.f32 %v884, %v896
    %v901 = vmax.f32 %v889, %v897
    %v902 = vmax.f32 %v892, %v898
    %903 = vst.msk [vmem:[#allocation8] sm:$0xff] %vm84, %v899
    %904 = vst.msk [vmem:[#allocation8 + $0x8] sm:$0xff] %vm84, %v900
    %905 = vst.msk [vmem:[#allocation8 + $0x10] sm:$0xff] %vm84, %v901
    %906 = vst.msk [vmem:[#allocation8 + $0x18] sm:$0xff] %vm84, %v902
    // Predicated region
    $region34: #{tpu_custom_call.1} parent=1 // pred_check
      _
    $region35: #{tpu_custom_call.1} parent=1 // pred_check_branch
      %908 = sbr.rel (0) target = $region37
    $region36: #{tpu_custom_call.1} parent=1 // pred_region
      %s910 = ssub.s32 512, 512
      %911 = vsyncadd [#allocation4], %s910
      %s912 = sshll.u32 [#allocation8], 4
      %s913 = int_to_ptr.vmem [resolvable:$true] %s912
      %918 = dma.vmem_to_hbm [thread:$0]  %s913, 512, %s5, [#allocation4], 128, 128, 8
    $region37: #{tpu_custom_call.1} parent=1 // pred_fallthru
      _
    // Predicated region
    $region38: #{tpu_custom_call.1} parent=1 // pred_check
      _
    $region39: #{tpu_custom_call.1} parent=1 // pred_check_branch
      %920 = sbr.rel (0) target = $region41
    $region40: #{tpu_custom_call.1} parent=1 // pred_region
      %921 = dma.done [#allocation4], 512
    $region41: #{tpu_custom_call.1} parent=1 // pred_fallthru
      _
    %922 = vsyncpa [#allocation3], 1
    %923 = vsyncpa [#allocation6], 1
    %924 = vsyncpa [#allocation4], 1

</llo_original>
